<compile_context>
chip_gen: v7x
topology: tpu7x:2x2x1
jax: 0.10.0
libtpu: 0.0.40
codegen_flags: <defaults>
</compile_context>

<pallas_src>
import functools

import jax
import jax.numpy as jnp
from jax.experimental import pallas as pl
from jax.experimental.pallas import tpu as pltpu

# Layer sizes from the PyTorch module.
DIMS = [41, 32, 16, 8, 16, 32, 41]   # encoder: 41->32->16->8, decoder: 8->16->32->41
N_LAYERS = len(DIMS) - 1             # 6 linear layers; ReLU after all but the last
PAD = 128                            # lane-dense padded feature width
IN_DIM = DIMS[0]                     # 41
OUT_DIM = DIMS[-1]                   # 41
IN_PAD = 48                          # input features padded to a multiple of 8


def _round_up(n, m):
    return ((n + m - 1) // m) * m


def _tensorcores_per_chip():
    """2 on v7x (where dimension_semantics='parallel' can shard the grid), else 1."""
    try:
        kind = jax.devices()[0].device_kind.lower()
    except Exception:
        return 1
    return 2 if "v7" in kind else 1


_TC_PER_CHIP = _tensorcores_per_chip()


def autoencoder_kernel(x_ref, w0_ref, w_ref, b_ref, o_ref):
    """Full forward pass for one batch tile, entirely in VMEM.

    x_ref:  (block_b, 48)     zero-padded input tile (dtype = I/O dtype)
    w0_ref: (48, 128)         zero-padded layer-0 weight (compute dtype)
    w_ref:  (5, 128, 128)     zero-padded layer-1..5 weights (compute dtype)
    b_ref:  (6, 1, 128)       zero-padded biases, float32
    o_ref:  (block_b, 41)     output tile (dtype = I/O dtype)
    """
    cdt = w0_ref.dtype                                      # compute (MXU) dtype

    # Layer 0: aligned K=48 matmul; output is lane-dense (bb, 128), f32 accum.
    h = jnp.dot(x_ref[...].astype(cdt), w0_ref[...],
                preferred_element_type=jnp.float32) + b_ref[0]
    h = jnp.maximum(h, 0.0)

    # Layers 1..5: 128x128 lane-dense matmuls (zero padding propagates exactly:
    # padded weight rows/cols are zero and ReLU(0) = 0).
    for layer in range(1, N_LAYERS):
        h = jnp.dot(h.astype(cdt), w_ref[layer - 1],
                    preferred_element_type=jnp.float32) + b_ref[layer]
        if layer < N_LAYERS - 1:                            # ReLU on all but last
            h = jnp.maximum(h, 0.0)

    # Single (block_b, 41) store per grid step.
    o_ref[...] = h[:, :OUT_DIM].astype(o_ref.dtype)


def init_params(key):
    """Deterministic init mimicking PyTorch nn.Linear defaults U(-1/sqrt(fan_in), +).

    Returns an unpadded list of (w, b) with w: (in, out), b: (1, out), i.e.
    y = x @ w + b  ==  PyTorch's x @ W.T + b with W of shape (out, in).
    """
    params = []
    for layer in range(N_LAYERS):
        fan_in, fan_out = DIMS[layer], DIMS[layer + 1]
        key, kw, kb = jax.random.split(key, 3)
        bound = 1.0 / jnp.sqrt(fan_in)
        w = jax.random.uniform(kw, (fan_in, fan_out), jnp.float32, -bound, bound)
        b = jax.random.uniform(kb, (1, fan_out), jnp.float32, -bound, bound)
        params.append((w, b))
    return params


def pack_params(params, compute_dtype=jnp.bfloat16):
    """Zero-pad and pack the parameters.

    Returns:
      w0_packed: (48, 128)     layer-0 weight, `compute_dtype`
      w_packed:  (5, 128, 128) layer-1..5 weights, `compute_dtype`
      b_packed:  (6, 1, 128)   biases, float32 (bias add happens in f32)
    """
    w0_packed = jnp.zeros((IN_PAD, PAD), compute_dtype)
    w_packed = jnp.zeros((N_LAYERS - 1, PAD, PAD), compute_dtype)
    b_packed = jnp.zeros((N_LAYERS, 1, PAD), jnp.float32)

    w, b = params[0]
    w0_packed = w0_packed.at[: w.shape[0], : w.shape[1]].set(w.astype(compute_dtype))
    b_packed = b_packed.at[0, :, : b.shape[1]].set(b)
    for i in range(1, N_LAYERS):
        w, b = params[i]
        w_packed = w_packed.at[i - 1, : w.shape[0], : w.shape[1]].set(
            w.astype(compute_dtype))
        b_packed = b_packed.at[i, :, : b.shape[1]].set(b)
    return w0_packed, w_packed, b_packed


@functools.partial(jax.jit, static_argnames=("block_b",))
def autoencoder_fcn(x, w0_packed, w_packed, b_packed, *, block_b=4096):
    """x: (B, 41). Returns (B, 41) with the same dtype as x.

    Pass a bfloat16 `x` for bf16 activation I/O (accumulation stays f32 inside
    the kernel); pack the weights with compute_dtype=jnp.float32 for an exact
    f32 mode.
    """
    B, F = x.shape
    assert F == IN_DIM

    # Effective batch tile: at most block_b, a multiple of 8.  Only on chips
    # with 2 TensorCores (v7x) force >= 2 grid steps so 'parallel' can shard
    # the grid across both cores; on v5e/v6e the grid is a serial loop and the
    # split would just double per-step overhead.
    eff = _round_up(min(block_b, _round_up(B, 8)), 8)
    if _TC_PER_CHIP > 1 and eff > 8 and pl.cdiv(_round_up(B, 8), eff) < 2:
        eff = max(8, _round_up(pl.cdiv(B, 2), 8))
    B_pad = _round_up(B, eff)

    # Pad batch rows (sliced off at the end) and features 41 -> 48 (aligned K).
    x_in = jnp.pad(x, ((0, B_pad - B), (0, IN_PAD - IN_DIM)))

    grid = (B_pad // eff,)

    in_specs = [
        pl.BlockSpec((eff, IN_PAD), lambda i: (i, 0)),                   # x tile
        pl.BlockSpec((IN_PAD, PAD), lambda i: (0, 0)),                   # layer-0 W
        pl.BlockSpec((N_LAYERS - 1, PAD, PAD), lambda i: (0, 0, 0)),     # W 1..5
        pl.BlockSpec((N_LAYERS, 1, PAD), lambda i: (0, 0, 0)),           # biases
    ]
    out_spec = pl.BlockSpec((eff, OUT_DIM), lambda i: (i, 0))

    # Padded (real MXU) FLOPs, not the tiny logical ones.
    flops = 2 * B_pad * (IN_PAD * PAD + (N_LAYERS - 1) * PAD * PAD)
    bytes_accessed = (
        B_pad * IN_PAD * x.dtype.itemsize
        + B_pad * OUT_DIM * x.dtype.itemsize
        + w0_packed.size * w0_packed.dtype.itemsize
        + w_packed.size * w_packed.dtype.itemsize
        + b_packed.size * b_packed.dtype.itemsize
    )
    cost = pl.CostEstimate(flops=flops, transcendentals=0,
                           bytes_accessed=bytes_accessed)

    out = pl.pallas_call(
        autoencoder_kernel,
        out_shape=jax.ShapeDtypeStruct((B_pad, OUT_DIM), x.dtype),
        grid=grid,
        in_specs=in_specs,
        out_specs=out_spec,
        compiler_params=pltpu.CompilerParams(
            dimension_semantics=("parallel",),
            # Raise v5e's 16 MiB default so the double-buffered 4096-row I/O
            # tiles fit; 32 MiB is still the default ceiling on v6e/v7x.
            vmem_limit_bytes=32 * 1024 * 1024,
        ),
        cost_estimate=cost,
    )(x_in, w0_packed, w_packed, b_packed)

    return out if B_pad == B else out[:B]


def autoencoder_ref(x, params):
    """Pure-JAX f32 reference for correctness checking (unpadded params)."""
    h = x
    for layer, (w, b) in enumerate(params):
        h = h @ w + b
        if layer < N_LAYERS - 1:
            h = jnp.maximum(h, 0.0)
    return h


if __name__ == "__main__":
    key = jax.random.PRNGKey(0)
    key, kx = jax.random.split(key)

    B = 16  # small deterministic test batch
    x = jax.random.normal(kx, (B, IN_DIM), jnp.float32)

    params = init_params(key)
    ref = autoencoder_ref(x, params)

    # Default fast path: bf16 MXU operands, f32 accumulation and f32 I/O.
    w0_bf, w_bf, b_pk = pack_params(params, compute_dtype=jnp.bfloat16)
    out = jax.block_until_ready(autoencoder_fcn(x, w0_bf, w_bf, b_pk))
    assert out.shape == (B, OUT_DIM)
    assert jnp.allclose(out, ref, atol=5e-2, rtol=5e-2), "bf16 path mismatch vs reference"

    # Exact-parity path: f32 weights on the MXU (same default matmul precision
    # as the JAX reference).
    w0_f, w_f, b_pk_f = pack_params(params, compute_dtype=jnp.float32)
    out_f32 = jax.block_until_ready(autoencoder_fcn(x, w0_f, w_f, b_pk_f))
    assert jnp.allclose(out_f32, ref, atol=1e-4, rtol=1e-4), "f32 path mismatch vs reference"

    print("KERNEL_OK")
</pallas_src>

<mosaic_0001>
module attributes {stable_mosaic.version = 11 : i64} {
  func.func @autoencoder_kernel(%arg0: i32, %arg1: memref<16x48xf32, #tpu.memory_space<vmem>>, %arg2: memref<48x128xbf16, #tpu.memory_space<vmem>>, %arg3: memref<5x128x128xbf16, #tpu.memory_space<vmem>>, %arg4: memref<6x1x128xf32, #tpu.memory_space<vmem>>, %arg5: memref<16x41xf32, #tpu.memory_space<vmem>>) attributes {dimension_semantics = [#tpu.dimension_semantics<parallel>], iteration_bounds = array<i64: 1>, scalar_prefetch = 0 : i64, scratch_operands = 0 : i64, tpu.core_type = #tpu.core_type<tc>, window_params = [{transform_indices = @transform_0, window_bounds = array<i64: 16, 48>}, {pipeline_mode = #tpu.pipeline_mode<synchronous>, transform_indices = @transform_1, window_bounds = array<i64: 48, 128>}, {pipeline_mode = #tpu.pipeline_mode<synchronous>, transform_indices = @transform_2, window_bounds = array<i64: 5, 128, 128>}, {pipeline_mode = #tpu.pipeline_mode<synchronous>, transform_indices = @transform_3, window_bounds = array<i64: 6, 1, 128>}, {transform_indices = @transform_4, window_bounds = array<i64: 16, 41>}]} {
    %c0 = arith.constant 0 : index
    %c0_0 = arith.constant 0 : index
    %0 = vector.load %arg1[%c0, %c0_0] : memref<16x48xf32, #tpu.memory_space<vmem>>, vector<16x48xf32>
    %1 = arith.truncf %0 : vector<16x48xf32> to vector<16x48xbf16>
    %c0_1 = arith.constant 0 : index
    %c0_2 = arith.constant 0 : index
    %2 = vector.load %arg2[%c0_1, %c0_2] : memref<48x128xbf16, #tpu.memory_space<vmem>>, vector<48x128xbf16>
    %cst = arith.constant dense<0.000000e+00> : vector<16x128xf32>
    %3 = tpu.matmul %1, %2, %cst {dimension_numbers = #tpu.dot_dimension_numbers<[1], [0], [0], [1], [0, 0, 1, 1], [], []>} : vector<16x48xbf16>, vector<48x128xbf16>, vector<16x128xf32> -> vector<16x128xf32>
    %c0_3 = arith.constant 0 : index
    %c0_4 = arith.constant 0 : index
    %c0_5 = arith.constant 0 : index
    %4 = vector.load %arg4[%c0_3, %c0_4, %c0_5] : memref<6x1x128xf32, #tpu.memory_space<vmem>>, vector<1x1x128xf32>
    %5 = vector.shape_cast %4 : vector<1x1x128xf32> to vector<1x128xf32>
    %6 = vector.broadcast %5 : vector<1x128xf32> to vector<16x128xf32>
    %7 = arith.addf %3, %6 : vector<16x128xf32>
    %cst_6 = arith.constant 0.000000e+00 : f32
    %8 = vector.broadcast %cst_6 : f32 to vector<16x128xf32>
    %9 = arith.maximumf %7, %8 : vector<16x128xf32>
    %10 = arith.truncf %9 : vector<16x128xf32> to vector<16x128xbf16>
    %c0_7 = arith.constant 0 : index
    %c0_8 = arith.constant 0 : index
    %c0_9 = arith.constant 0 : index
    %11 = vector.load %arg3[%c0_7, %c0_8, %c0_9] : memref<5x128x128xbf16, #tpu.memory_space<vmem>>, vector<1x128x128xbf16>
    %12 = vector.shape_cast %11 : vector<1x128x128xbf16> to vector<128x128xbf16>
    %cst_10 = arith.constant dense<0.000000e+00> : vector<16x128xf32>
    %13 = tpu.matmul %10, %12, %cst_10 {dimension_numbers = #tpu.dot_dimension_numbers<[1], [0], [0], [1], [0, 0, 1, 1], [], []>} : vector<16x128xbf16>, vector<128x128xbf16>, vector<16x128xf32> -> vector<16x128xf32>
    %c1 = arith.constant 1 : index
    %c0_11 = arith.constant 0 : index
    %c0_12 = arith.constant 0 : index
    %14 = vector.load %arg4[%c1, %c0_11, %c0_12] : memref<6x1x128xf32, #tpu.memory_space<vmem>>, vector<1x1x128xf32>
    %15 = vector.shape_cast %14 : vector<1x1x128xf32> to vector<1x128xf32>
    %16 = vector.broadcast %15 : vector<1x128xf32> to vector<16x128xf32>
    %17 = arith.addf %13, %16 : vector<16x128xf32>
    %cst_13 = arith.constant 0.000000e+00 : f32
    %18 = vector.broadcast %cst_13 : f32 to vector<16x128xf32>
    %19 = arith.maximumf %17, %18 : vector<16x128xf32>
    %20 = arith.truncf %19 : vector<16x128xf32> to vector<16x128xbf16>
    %c1_14 = arith.constant 1 : index
    %c0_15 = arith.constant 0 : index
    %c0_16 = arith.constant 0 : index
    %21 = vector.load %arg3[%c1_14, %c0_15, %c0_16] : memref<5x128x128xbf16, #tpu.memory_space<vmem>>, vector<1x128x128xbf16>
    %22 = vector.shape_cast %21 : vector<1x128x128xbf16> to vector<128x128xbf16>
    %cst_17 = arith.constant dense<0.000000e+00> : vector<16x128xf32>
    %23 = tpu.matmul %20, %22, %cst_17 {dimension_numbers = #tpu.dot_dimension_numbers<[1], [0], [0], [1], [0, 0, 1, 1], [], []>} : vector<16x128xbf16>, vector<128x128xbf16>, vector<16x128xf32> -> vector<16x128xf32>
    %c2 = arith.constant 2 : index
    %c0_18 = arith.constant 0 : index
    %c0_19 = arith.constant 0 : index
    %24 = vector.load %arg4[%c2, %c0_18, %c0_19] : memref<6x1x128xf32, #tpu.memory_space<vmem>>, vector<1x1x128xf32>
    %25 = vector.shape_cast %24 : vector<1x1x128xf32> to vector<1x128xf32>
    %26 = vector.broadcast %25 : vector<1x128xf32> to vector<16x128xf32>
    %27 = arith.addf %23, %26 : vector<16x128xf32>
    %cst_20 = arith.constant 0.000000e+00 : f32
    %28 = vector.broadcast %cst_20 : f32 to vector<16x128xf32>
    %29 = arith.maximumf %27, %28 : vector<16x128xf32>
    %30 = arith.truncf %29 : vector<16x128xf32> to vector<16x128xbf16>
    %c2_21 = arith.constant 2 : index
    %c0_22 = arith.constant 0 : index
    %c0_23 = arith.constant 0 : index
    %31 = vector.load %arg3[%c2_21, %c0_22, %c0_23] : memref<5x128x128xbf16, #tpu.memory_space<vmem>>, vector<1x128x128xbf16>
    %32 = vector.shape_cast %31 : vector<1x128x128xbf16> to vector<128x128xbf16>
    %cst_24 = arith.constant dense<0.000000e+00> : vector<16x128xf32>
    %33 = tpu.matmul %30, %32, %cst_24 {dimension_numbers = #tpu.dot_dimension_numbers<[1], [0], [0], [1], [0, 0, 1, 1], [], []>} : vector<16x128xbf16>, vector<128x128xbf16>, vector<16x128xf32> -> vector<16x128xf32>
    %c3 = arith.constant 3 : index
    %c0_25 = arith.constant 0 : index
    %c0_26 = arith.constant 0 : index
    %34 = vector.load %arg4[%c3, %c0_25, %c0_26] : memref<6x1x128xf32, #tpu.memory_space<vmem>>, vector<1x1x128xf32>
    %35 = vector.shape_cast %34 : vector<1x1x128xf32> to vector<1x128xf32>
    %36 = vector.broadcast %35 : vector<1x128xf32> to vector<16x128xf32>
    %37 = arith.addf %33, %36 : vector<16x128xf32>
    %cst_27 = arith.constant 0.000000e+00 : f32
    %38 = vector.broadcast %cst_27 : f32 to vector<16x128xf32>
    %39 = arith.maximumf %37, %38 : vector<16x128xf32>
    %40 = arith.truncf %39 : vector<16x128xf32> to vector<16x128xbf16>
    %c3_28 = arith.constant 3 : index
    %c0_29 = arith.constant 0 : index
    %c0_30 = arith.constant 0 : index
    %41 = vector.load %arg3[%c3_28, %c0_29, %c0_30] : memref<5x128x128xbf16, #tpu.memory_space<vmem>>, vector<1x128x128xbf16>
    %42 = vector.shape_cast %41 : vector<1x128x128xbf16> to vector<128x128xbf16>
    %cst_31 = arith.constant dense<0.000000e+00> : vector<16x128xf32>
    %43 = tpu.matmul %40, %42, %cst_31 {dimension_numbers = #tpu.dot_dimension_numbers<[1], [0], [0], [1], [0, 0, 1, 1], [], []>} : vector<16x128xbf16>, vector<128x128xbf16>, vector<16x128xf32> -> vector<16x128xf32>
    %c4 = arith.constant 4 : index
    %c0_32 = arith.constant 0 : index
    %c0_33 = arith.constant 0 : index
    %44 = vector.load %arg4[%c4, %c0_32, %c0_33] : memref<6x1x128xf32, #tpu.memory_space<vmem>>, vector<1x1x128xf32>
    %45 = vector.shape_cast %44 : vector<1x1x128xf32> to vector<1x128xf32>
    %46 = vector.broadcast %45 : vector<1x128xf32> to vector<16x128xf32>
    %47 = arith.addf %43, %46 : vector<16x128xf32>
    %cst_34 = arith.constant 0.000000e+00 : f32
    %48 = vector.broadcast %cst_34 : f32 to vector<16x128xf32>
    %49 = arith.maximumf %47, %48 : vector<16x128xf32>
    %50 = arith.truncf %49 : vector<16x128xf32> to vector<16x128xbf16>
    %c4_35 = arith.constant 4 : index
    %c0_36 = arith.constant 0 : index
    %c0_37 = arith.constant 0 : index
    %51 = vector.load %arg3[%c4_35, %c0_36, %c0_37] : memref<5x128x128xbf16, #tpu.memory_space<vmem>>, vector<1x128x128xbf16>
    %52 = vector.shape_cast %51 : vector<1x128x128xbf16> to vector<128x128xbf16>
    %cst_38 = arith.constant dense<0.000000e+00> : vector<16x128xf32>
    %53 = tpu.matmul %50, %52, %cst_38 {dimension_numbers = #tpu.dot_dimension_numbers<[1], [0], [0], [1], [0, 0, 1, 1], [], []>} : vector<16x128xbf16>, vector<128x128xbf16>, vector<16x128xf32> -> vector<16x128xf32>
    %c5 = arith.constant 5 : index
    %c0_39 = arith.constant 0 : index
    %c0_40 = arith.constant 0 : index
    %54 = vector.load %arg4[%c5, %c0_39, %c0_40] : memref<6x1x128xf32, #tpu.memory_space<vmem>>, vector<1x1x128xf32>
    %55 = vector.shape_cast %54 : vector<1x1x128xf32> to vector<1x128xf32>
    %56 = vector.broadcast %55 : vector<1x128xf32> to vector<16x128xf32>
    %57 = arith.addf %53, %56 : vector<16x128xf32>
    %58 = vector.extract_strided_slice %57 {offsets = [0, 0], sizes = [16, 41], strides = [1, 1]} : vector<16x128xf32> to vector<16x41xf32>
    %c0_41 = arith.constant 0 : index
    %c0_42 = arith.constant 0 : index
    %59 = vector.load %arg5[%c0_41, %c0_42] : memref<16x41xf32, #tpu.memory_space<vmem>>, vector<16x41xf32>
    tpu.vector_store %arg5[%c0_41, %c0_42], %58 {strides = array<i32>} : memref<16x41xf32, #tpu.memory_space<vmem>>, vector<16x41xf32>,
    return
  }
  func.func @transform_0(%arg0: i32) -> (i32, i32) {
    %c0_i32 = arith.constant 0 : i32
    %c0_i32_0 = arith.constant 0 : i32
    return %arg0, %c0_i32 : i32, i32
  }
  func.func @transform_1(%arg0: i32) -> (i32, i32) {
    %c0_i32 = arith.constant 0 : i32
    %c0_i32_0 = arith.constant 0 : i32
    %c0_i32_1 = arith.constant 0 : i32
    return %c0_i32, %c0_i32_0 : i32, i32
  }
  func.func @transform_2(%arg0: i32) -> (i32, i32, i32) {
    %c0_i32 = arith.constant 0 : i32
    %c0_i32_0 = arith.constant 0 : i32
    %c0_i32_1 = arith.constant 0 : i32
    %c0_i32_2 = arith.constant 0 : i32
    return %c0_i32, %c0_i32_0, %c0_i32_1 : i32, i32, i32
  }
  func.func @transform_3(%arg0: i32) -> (i32, i32, i32) {
    %c0_i32 = arith.constant 0 : i32
    %c0_i32_0 = arith.constant 0 : i32
    %c0_i32_1 = arith.constant 0 : i32
    %c0_i32_2 = arith.constant 0 : i32
    return %c0_i32, %c0_i32_0, %c0_i32_1 : i32, i32, i32
  }
  func.func @transform_4(%arg0: i32) -> (i32, i32) {
    %c0_i32 = arith.constant 0 : i32
    %c0_i32_0 = arith.constant 0 : i32
    return %arg0, %c0_i32 : i32, i32
  }
}

</mosaic_0001>

<llo_original>
// kernel: autoencoder_fcn.1
$region0: #{autoencoder_fcn.1}
  #allocation0 [shape = 'u32[]', space=smem, size = 0x4, offset = 0x4, fixed_abs, tag = 'smem constant byte address 0x4 - core index']
  #allocation1 [shape = 'u32[144,128]{1,0:T(1,128)}', space=vmem, size = 0x12000, scoped, tag = 'internal scratch']
  %s0 = inlined_call_operand.vmem [shape: f32[16,48], index: 0, kind: input, shape index: {}]
  %s1 = inlined_call_operand.vmem [shape: bf16[48,128], index: 1, kind: input, shape index: {}]
  %s2 = inlined_call_operand.hbm [shape: bf16[5,128,128], index: 2, kind: input, shape index: {}]
  %s3 = inlined_call_operand.vmem [shape: f32[6,1,128], index: 3, kind: input, shape index: {}]
  %s4 = inlined_call_operand.hbm [shape: f32[16,41], index: 4, kind: output, shape index: {}]
  %s5 = sld [smem:[#allocation0]]
  $region30: #{autoencoder_fcn.1} parent=0
    _
  %s7 = ssub.s32 1, %s5
  %s8 = scalar_select 0, %s7, %s5
  $region1: #{autoencoder_fcn.1} parent=0
    #allocation2 [shape = 'u8[163840]{0}', space=vmem, size = 0x28000, scoped, tag = 'input window, operand 2, single buffered']
    #allocation3 [shape = 's32[1]{0}', space=sflag, size = 0x4, scoped, tag = 'scoped memory for autoencoder_fcn.1']
    #allocation4 [shape = 's32[1]{0}', space=sflag, size = 0x4, scoped, tag = 'scoped memory for autoencoder_fcn.1']
    #allocation5 [shape = 'u8[8192]{0}', space=vmem, size = 0x2000, scoped, tag = 'output window, operand 0, single buffered']
    %9 = vsyncpa [#allocation3], 0
    %10 = vsyncpa [#allocation4], 0
    // Predicated region
    $region2: #{autoencoder_fcn.1} parent=1 // pred_check
      _
    $region3: #{autoencoder_fcn.1} parent=1 // pred_check_branch
      %12 = sbr.rel (0) target = $region5
    $region4: #{autoencoder_fcn.1} parent=1 // pred_region
      _
    $region5: #{autoencoder_fcn.1} parent=1 // pred_fallthru
      _
    // Predicated region
    $region6: #{autoencoder_fcn.1} parent=1 // pred_check
      _
    $region7: #{autoencoder_fcn.1} parent=1 // pred_check_branch
      %14 = sbr.rel (0) target = $region9
    $region8: #{autoencoder_fcn.1} parent=1 // pred_region
      _
    $region9: #{autoencoder_fcn.1} parent=1 // pred_fallthru
      _
    // Predicated region
    $region10: #{autoencoder_fcn.1} parent=1 // pred_check
      _
    $region11: #{autoencoder_fcn.1} parent=1 // pred_check_branch
      %16 = sbr.rel (0) target = $region13
    $region12: #{autoencoder_fcn.1} parent=1 // pred_region
      %s18 = ssub.s32 5120, 5120
      %19 = vsyncadd [#allocation3], %s18
      %s20 = sshll.u32 [#allocation2], 4
      %s21 = int_to_ptr.vmem [resolvable:$true] %s20
      %26 = dma.hbm_to_vmem [thread:$0]  %s2, 5120, %s21, [#allocation3], 64, 64, 4
    $region13: #{autoencoder_fcn.1} parent=1 // pred_fallthru
      _
    // Predicated region
    $region14: #{autoencoder_fcn.1} parent=1 // pred_check
      _
    $region15: #{autoencoder_fcn.1} parent=1 // pred_check_branch
      %28 = sbr.rel (0) target = $region17
    $region16: #{autoencoder_fcn.1} parent=1 // pred_region
      _
    $region17: #{autoencoder_fcn.1} parent=1 // pred_fallthru
      _
    // Predicated region
    $region18: #{autoencoder_fcn.1} parent=1 // pred_check
      _
    $region19: #{autoencoder_fcn.1} parent=1 // pred_check_branch
      %30 = sbr.rel (0) target = $region21
    $region20: #{autoencoder_fcn.1} parent=1 // pred_region
      %31 = dma.done [#allocation3], 5120
    $region21: #{autoencoder_fcn.1} parent=1 // pred_fallthru
      _
    %v33 = vld [vmem:[%s0] sm:$0xff]
    %v34 = vld [vmem:[%s0 + $0x8] sm:$0xff]
    %v35 = vpack.c.bf16 %v34, %v33
    %v36 = vld [vmem:[%s1] sm:$0xf]
    %v37 = vld [vmem:[%s1 + $0x4] sm:$0xf]
    %v38 = vld [vmem:[%s1 + $0x8] sm:$0xf]
    %v39 = vld [vmem:[%s1 + $0xc] sm:$0xf]
    %v40 = vld [vmem:[%s1 + $0x10] sm:$0xf]
    %v41 = vld [vmem:[%s1 + $0x14] sm:$0xf]
    %v42 = vld [vmem:[%s3] sm:$0x1]
    %v44 = vlaneseq
    %v45 = vshrl.u32 %v44, 7
    %v46 = vsub.s32 0, %v45
    %v47 = vrot.slane %v42, %v46
    %v55 = vunpack.c.l.b16 %v36
    %v56 = vunpack.c.l.b16 %v37
    %v57 = vunpack.c.l.b16 %v38
    %v58 = vunpack.c.l.b16 %v39
    %v59 = vunpack.c.l.b16 %v40
    %v60 = vunpack.c.l.b16 %v41
    %v61 = vpack.c.b16 %v56, %v55
    %v62 = vpack.c.b16 %v58, %v57
    %v63 = vpack.c.b16 %v60, %v59
    %vm67 = vcmask 392192
    %v69 = vsel %vm67, %v35, 0
    %71 = vmatprep.subr.bf16.mxu0 0
    %72 = vmatpush1.bf16.msra.mxu0 %v61
    %73 = vmatprep.subr.bf16.mxu0 0
    %74 = vmatpush1.bf16.msra.mxu0 %v62
    %75 = vmatprep.subr.bf16.mxu0 0
    %76 = vmatpush1.bf16.msra.mxu0 %v63
    %77 = vmatprep.subr.bf16.mxu0 0
    %78 = vmatpush1.bf16.msra.mxu0 0
    %79 = vmatprep.subr.bf16.mxu0 0
    %80 = vmatpush1.bf16.msra.mxu0 0
    %81 = vmatprep.subr.bf16.mxu0 0
    %82 = vmatpush1.bf16.msra.mxu0 0
    %83 = vmatprep.subr.bf16.mxu0 0
    %84 = vmatpush1.bf16.msra.mxu0 0
    %85 = vmatprep.subr.bf16.mxu0 0
    %86 = vmatpush1.bf16.msra.mxu0 0
    %87 = vmatprep.subr.bf16.mxu0 0
    %88 = vmatpush1.bf16.msra.mxu0 0
    %89 = vmatprep.subr.bf16.mxu0 0
    %90 = vmatpush1.bf16.msra.mxu0 0
    %91 = vmatprep.subr.bf16.mxu0 0
    %92 = vmatpush1.bf16.msra.mxu0 0
    %93 = vmatprep.subr.bf16.mxu0 0
    %94 = vmatpush1.bf16.msra.mxu0 0
    %95 = vmatprep.subr.bf16.mxu0 0
    %96 = vmatpush1.bf16.msra.mxu0 0
    %97 = vmatprep.subr.bf16.mxu0 0
    %98 = vmatpush1.bf16.msra.mxu0 0
    %99 = vmatprep.subr.bf16.mxu0 0
    %100 = vmatpush1.bf16.msra.mxu0 0
    %101 = vmatprep.subr.bf16.mxu0 0
    %102 = vmatpush1.bf16.msra.mxu0 0
    %103 = vmatprep.mubr.bf16.mxu0 0
    %104 = vmatmul.mubr.bf16.gmra.mrb[0].mxu0 %v69
    %v105 = vpop.f32.mrb[0].mxu0
    %v106 = vadd.f32 %v47, %v105
    %v107 = vpop.f32.mrb[0].mxu0
    %v108 = vpop.f32.mrb[0].mxu0
    %v109 = vadd.f32 %v47, %v108
    %v110 = vpop.f32.mrb[0].mxu0
    %111 = vdwg.mxu0
    %v112 = vmax.f32 %v106, 0.0
    %v113 = vmax.f32 %v109, 0.0
    %v114 = vpack.c.bf16 %v113, %v112
    %v115 = vld [vmem:[#allocation2] sm:$0xf]
    %v116 = vld [vmem:[#allocation2 + $0x4] sm:$0xf]
    %v117 = vld [vmem:[#allocation2 + $0x8] sm:$0xf]
    %v118 = vld [vmem:[#allocation2 + $0xc] sm:$0xf]
    %v119 = vld [vmem:[#allocation2 + $0x10] sm:$0xf]
    %v120 = vld [vmem:[#allocation2 + $0x14] sm:$0xf]
    %v121 = vld [vmem:[#allocation2 + $0x18] sm:$0xf]
    %v122 = vld [vmem:[#allocation2 + $0x1c] sm:$0xf]
    %v123 = vld [vmem:[#allocation2 + $0x20] sm:$0xf]
    %v124 = vld [vmem:[#allocation2 + $0x24] sm:$0xf]
    %v125 = vld [vmem:[#allocation2 + $0x28] sm:$0xf]
    %v126 = vld [vmem:[#allocation2 + $0x2c] sm:$0xf]
    %v127 = vld [vmem:[#allocation2 + $0x30] sm:$0xf]
    %v128 = vld [vmem:[#allocation2 + $0x34] sm:$0xf]
    %v129 = vld [vmem:[#allocation2 + $0x38] sm:$0xf]
    %v130 = vld [vmem:[#allocation2 + $0x3c] sm:$0xf]
    %s131 = scalar_lea.vmem %s3, 1
    %v132 = vld [vmem:[%s131] sm:$0x1]
    %v134 = vlaneseq
    %v135 = vshrl.u32 %v134, 7
    %v136 = vsub.s32 0, %v135
    %v137 = vrot.slane %v132, %v136
    %v155 = vunpack.c.l.b16 %v115
    %v156 = vunpack.c.l.b16 %v116
    %v157 = vunpack.c.l.b16 %v117
    %v158 = vunpack.c.l.b16 %v118
    %v159 = vunpack.c.l.b16 %v119
    %v160 = vunpack.c.l.b16 %v120
    %v161 = vunpack.c.l.b16 %v121
    %v162 = vunpack.c.l.b16 %v122
    %v163 = vunpack.c.l.b16 %v123
    %v164 = vunpack.c.l.b16 %v124
    %v165 = vunpack.c.l.b16 %v125
    %v166 = vunpack.c.l.b16 %v126
    %v167 = vunpack.c.l.b16 %v127
    %v168 = vunpack.c.l.b16 %v128
    %v169 = vunpack.c.l.b16 %v129
    %v170 = vunpack.c.l.b16 %v130
    %v171 = vpack.c.b16 %v156, %v155
    %v172 = vpack.c.b16 %v158, %v157
    %v173 = vpack.c.b16 %v160, %v159
    %v174 = vpack.c.b16 %v162, %v161
    %v175 = vpack.c.b16 %v164, %v163
    %v176 = vpack.c.b16 %v166, %v165
    %v177 = vpack.c.b16 %v168, %v167
    %v178 = vpack.c.b16 %v170, %v169
    %187 = vmatprep.subr.bf16.mxu0 0
    %188 = vmatpush1.bf16.msra.mxu0 %v171
    %189 = vmatprep.subr.bf16.mxu0 0
    %190 = vmatpush1.bf16.msra.mxu0 %v172
    %191 = vmatprep.subr.bf16.mxu0 0
    %192 = vmatpush1.bf16.msra.mxu0 %v173
    %193 = vmatprep.subr.bf16.mxu0 0
    %194 = vmatpush1.bf16.msra.mxu0 %v174
    %195 = vmatprep.subr.bf16.mxu0 0
    %196 = vmatpush1.bf16.msra.mxu0 %v175
    %197 = vmatprep.subr.bf16.mxu0 0
    %198 = vmatpush1.bf16.msra.mxu0 %v176
    %199 = vmatprep.subr.bf16.mxu0 0
    %200 = vmatpush1.bf16.msra.mxu0 %v177
    %201 = vmatprep.subr.bf16.mxu0 0
    %202 = vmatpush1.bf16.msra.mxu0 %v178
    %203 = vmatprep.subr.bf16.mxu0 0
    %204 = vmatpush1.bf16.msra.mxu0 0
    %205 = vmatprep.subr.bf16.mxu0 0
    %206 = vmatpush1.bf16.msra.mxu0 0
    %207 = vmatprep.subr.bf16.mxu0 0
    %208 = vmatpush1.bf16.msra.mxu0 0
    %209 = vmatprep.subr.bf16.mxu0 0
    %210 = vmatpush1.bf16.msra.mxu0 0
    %211 = vmatprep.subr.bf16.mxu0 0
    %212 = vmatpush1.bf16.msra.mxu0 0
    %213 = vmatprep.subr.bf16.mxu0 0
    %214 = vmatpush1.bf16.msra.mxu0 0
    %215 = vmatprep.subr.bf16.mxu0 0
    %216 = vmatpush1.bf16.msra.mxu0 0
    %217 = vmatprep.subr.bf16.mxu0 0
    %218 = vmatpush1.bf16.msra.mxu0 0
    %219 = vmatprep.mubr.bf16.mxu0 0
    %220 = vmatmul.mubr.bf16.gmra.mrb[0].mxu0 %v114
    %v221 = vpop.f32.mrb[0].mxu0
    %v222 = vadd.f32 %v137, %v221
    %v223 = vpop.f32.mrb[0].mxu0
    %v224 = vpop.f32.mrb[0].mxu0
    %v225 = vadd.f32 %v137, %v224
    %v226 = vpop.f32.mrb[0].mxu0
    %227 = vdwg.mxu0
    %v228 = vmax.f32 %v222, 0.0
    %v229 = vmax.f32 %v225, 0.0
    %v230 = vpack.c.bf16 %v229, %v228
    %s231 = scalar_lea.vmem [#allocation2], 64
    %v232 = vld [vmem:[%s231] sm:$0xf]
    %v233 = vld [vmem:[%s231 + $0x4] sm:$0xf]
    %v234 = vld [vmem:[%s231 + $0x8] sm:$0xf]
    %v235 = vld [vmem:[%s231 + $0xc] sm:$0xf]
    %v236 = vld [vmem:[%s231 + $0x10] sm:$0xf]
    %v237 = vld [vmem:[%s231 + $0x14] sm:$0xf]
    %v238 = vld [vmem:[%s231 + $0x18] sm:$0xf]
    %v239 = vld [vmem:[%s231 + $0x1c] sm:$0xf]
    %v240 = vld [vmem:[%s231 + $0x20] sm:$0xf]
    %v241 = vld [vmem:[%s231 + $0x24] sm:$0xf]
    %v242 = vld [vmem:[%s231 + $0x28] sm:$0xf]
    %v243 = vld [vmem:[%s231 + $0x2c] sm:$0xf]
    %v244 = vld [vmem:[%s231 + $0x30] sm:$0xf]
    %v245 = vld [vmem:[%s231 + $0x34] sm:$0xf]
    %v246 = vld [vmem:[%s231 + $0x38] sm:$0xf]
    %v247 = vld [vmem:[%s231 + $0x3c] sm:$0xf]
    %s248 = scalar_lea.vmem %s3, 2
    %v249 = vld [vmem:[%s248] sm:$0x1]
    %v251 = vlaneseq
    %v252 = vshrl.u32 %v251, 7
    %v253 = vsub.s32 0, %v252
    %v254 = vrot.slane %v249, %v253
    %v272 = vunpack.c.l.b16 %v232
    %v273 = vunpack.c.l.b16 %v233
    %v274 = vunpack.c.l.b16 %v234
    %v275 = vunpack.c.l.b16 %v235
    %v276 = vunpack.c.l.b16 %v236
    %v277 = vunpack.c.l.b16 %v237
    %v278 = vunpack.c.l.b16 %v238
    %v279 = vunpack.c.l.b16 %v239
    %v280 = vunpack.c.l.b16 %v240
    %v281 = vunpack.c.l.b16 %v241
    %v282 = vunpack.c.l.b16 %v242
    %v283 = vunpack.c.l.b16 %v243
    %v284 = vunpack.c.l.b16 %v244
    %v285 = vunpack.c.l.b16 %v245
    %v286 = vunpack.c.l.b16 %v246
    %v287 = vunpack.c.l.b16 %v247
    %v288 = vpack.c.b16 %v273, %v272
    %v289 = vpack.c.b16 %v275, %v274
    %v290 = vpack.c.b16 %v277, %v276
    %v291 = vpack.c.b16 %v279, %v278
    %v292 = vpack.c.b16 %v281, %v280
    %v293 = vpack.c.b16 %v283, %v282
    %v294 = vpack.c.b16 %v285, %v284
    %v295 = vpack.c.b16 %v287, %v286
    %304 = vmatprep.subr.bf16.mxu0 0
    %305 = vmatpush1.bf16.msra.mxu0 %v288
    %306 = vmatprep.subr.bf16.mxu0 0
    %307 = vmatpush1.bf16.msra.mxu0 %v289
    %308 = vmatprep.subr.bf16.mxu0 0
    %309 = vmatpush1.bf16.msra.mxu0 %v290
    %310 = vmatprep.subr.bf16.mxu0 0
    %311 = vmatpush1.bf16.msra.mxu0 %v291
    %312 = vmatprep.subr.bf16.mxu0 0
    %313 = vmatpush1.bf16.msra.mxu0 %v292
    %314 = vmatprep.subr.bf16.mxu0 0
    %315 = vmatpush1.bf16.msra.mxu0 %v293
    %316 = vmatprep.subr.bf16.mxu0 0
    %317 = vmatpush1.bf16.msra.mxu0 %v294
    %318 = vmatprep.subr.bf16.mxu0 0
    %319 = vmatpush1.bf16.msra.mxu0 %v295
    %320 = vmatprep.subr.bf16.mxu0 0
    %321 = vmatpush1.bf16.msra.mxu0 0
    %322 = vmatprep.subr.bf16.mxu0 0
    %323 = vmatpush1.bf16.msra.mxu0 0
    %324 = vmatprep.subr.bf16.mxu0 0
    %325 = vmatpush1.bf16.msra.mxu0 0
    %326 = vmatprep.subr.bf16.mxu0 0
    %327 = vmatpush1.bf16.msra.mxu0 0
    %328 = vmatprep.subr.bf16.mxu0 0
    %329 = vmatpush1.bf16.msra.mxu0 0
    %330 = vmatprep.subr.bf16.mxu0 0
    %331 = vmatpush1.bf16.msra.mxu0 0
    %332 = vmatprep.subr.bf16.mxu0 0
    %333 = vmatpush1.bf16.msra.mxu0 0
    %334 = vmatprep.subr.bf16.mxu0 0
    %335 = vmatpush1.bf16.msra.mxu0 0
    %336 = vmatprep.mubr.bf16.mxu0 0
    %337 = vmatmul.mubr.bf16.gmra.mrb[0].mxu0 %v230
    %v338 = vpop.f32.mrb[0].mxu0
    %v339 = vadd.f32 %v254, %v338
    %v340 = vpop.f32.mrb[0].mxu0
    %v341 = vpop.f32.mrb[0].mxu0
    %v342 = vadd.f32 %v254, %v341
    %v343 = vpop.f32.mrb[0].mxu0
    %344 = vdwg.mxu0
    %v345 = vmax.f32 %v339, 0.0
    %v346 = vmax.f32 %v342, 0.0
    %v347 = vpack.c.bf16 %v346, %v345
    %s348 = scalar_lea.vmem [#allocation2], 128
    %v349 = vld [vmem:[%s348] sm:$0xf]
    %v350 = vld [vmem:[%s348 + $0x4] sm:$0xf]
    %v351 = vld [vmem:[%s348 + $0x8] sm:$0xf]
    %v352 = vld [vmem:[%s348 + $0xc] sm:$0xf]
    %v353 = vld [vmem:[%s348 + $0x10] sm:$0xf]
    %v354 = vld [vmem:[%s348 + $0x14] sm:$0xf]
    %v355 = vld [vmem:[%s348 + $0x18] sm:$0xf]
    %v356 = vld [vmem:[%s348 + $0x1c] sm:$0xf]
    %v357 = vld [vmem:[%s348 + $0x20] sm:$0xf]
    %v358 = vld [vmem:[%s348 + $0x24] sm:$0xf]
    %v359 = vld [vmem:[%s348 + $0x28] sm:$0xf]
    %v360 = vld [vmem:[%s348 + $0x2c] sm:$0xf]
    %v361 = vld [vmem:[%s348 + $0x30] sm:$0xf]
    %v362 = vld [vmem:[%s348 + $0x34] sm:$0xf]
    %v363 = vld [vmem:[%s348 + $0x38] sm:$0xf]
    %v364 = vld [vmem:[%s348 + $0x3c] sm:$0xf]
    %s365 = scalar_lea.vmem %s3, 3
    %v366 = vld [vmem:[%s365] sm:$0x1]
    %v368 = vlaneseq
    %v369 = vshrl.u32 %v368, 7
    %v370 = vsub.s32 0, %v369
    %v371 = vrot.slane %v366, %v370
    %v389 = vunpack.c.l.b16 %v349
    %v390 = vunpack.c.l.b16 %v350
    %v391 = vunpack.c.l.b16 %v351
    %v392 = vunpack.c.l.b16 %v352
    %v393 = vunpack.c.l.b16 %v353
    %v394 = vunpack.c.l.b16 %v354
    %v395 = vunpack.c.l.b16 %v355
    %v396 = vunpack.c.l.b16 %v356
    %v397 = vunpack.c.l.b16 %v357
    %v398 = vunpack.c.l.b16 %v358
    %v399 = vunpack.c.l.b16 %v359
    %v400 = vunpack.c.l.b16 %v360
    %v401 = vunpack.c.l.b16 %v361
    %v402 = vunpack.c.l.b16 %v362
    %v403 = vunpack.c.l.b16 %v363
    %v404 = vunpack.c.l.b16 %v364
    %v405 = vpack.c.b16 %v390, %v389
    %v406 = vpack.c.b16 %v392, %v391
    %v407 = vpack.c.b16 %v394, %v393
    %v408 = vpack.c.b16 %v396, %v395
    %v409 = vpack.c.b16 %v398, %v397
    %v410 = vpack.c.b16 %v400, %v399
    %v411 = vpack.c.b16 %v402, %v401
    %v412 = vpack.c.b16 %v404, %v403
    %421 = vmatprep.subr.bf16.mxu0 0
    %422 = vmatpush1.bf16.msra.mxu0 %v405
    %423 = vmatprep.subr.bf16.mxu0 0
    %424 = vmatpush1.bf16.msra.mxu0 %v406
    %425 = vmatprep.subr.bf16.mxu0 0
    %426 = vmatpush1.bf16.msra.mxu0 %v407
    %427 = vmatprep.subr.bf16.mxu0 0
    %428 = vmatpush1.bf16.msra.mxu0 %v408
    %429 = vmatprep.subr.bf16.mxu0 0
    %430 = vmatpush1.bf16.msra.mxu0 %v409
    %431 = vmatprep.subr.bf16.mxu0 0
    %432 = vmatpush1.bf16.msra.mxu0 %v410
    %433 = vmatprep.subr.bf16.mxu0 0
    %434 = vmatpush1.bf16.msra.mxu0 %v411
    %435 = vmatprep.subr.bf16.mxu0 0
    %436 = vmatpush1.bf16.msra.mxu0 %v412
    %437 = vmatprep.subr.bf16.mxu0 0
    %438 = vmatpush1.bf16.msra.mxu0 0
    %439 = vmatprep.subr.bf16.mxu0 0
    %440 = vmatpush1.bf16.msra.mxu0 0
    %441 = vmatprep.subr.bf16.mxu0 0
    %442 = vmatpush1.bf16.msra.mxu0 0
    %443 = vmatprep.subr.bf16.mxu0 0
    %444 = vmatpush1.bf16.msra.mxu0 0
    %445 = vmatprep.subr.bf16.mxu0 0
    %446 = vmatpush1.bf16.msra.mxu0 0
    %447 = vmatprep.subr.bf16.mxu0 0
    %448 = vmatpush1.bf16.msra.mxu0 0
    %449 = vmatprep.subr.bf16.mxu0 0
    %450 = vmatpush1.bf16.msra.mxu0 0
    %451 = vmatprep.subr.bf16.mxu0 0
    %452 = vmatpush1.bf16.msra.mxu0 0
    %453 = vmatprep.mubr.bf16.mxu0 0
    %454 = vmatmul.mubr.bf16.gmra.mrb[0].mxu0 %v347
    %v455 = vpop.f32.mrb[0].mxu0
    %v456 = vadd.f32 %v371, %v455
    %v457 = vpop.f32.mrb[0].mxu0
    %v458 = vpop.f32.mrb[0].mxu0
    %v459 = vadd.f32 %v371, %v458
    %v460 = vpop.f32.mrb[0].mxu0
    %461 = vdwg.mxu0
    %v462 = vmax.f32 %v456, 0.0
    %v463 = vmax.f32 %v459, 0.0
    %v464 = vpack.c.bf16 %v463, %v462
    %s465 = scalar_lea.vmem [#allocation2], 192
    %v466 = vld [vmem:[%s465] sm:$0xf]
    %v467 = vld [vmem:[%s465 + $0x4] sm:$0xf]
    %v468 = vld [vmem:[%s465 + $0x8] sm:$0xf]
    %v469 = vld [vmem:[%s465 + $0xc] sm:$0xf]
    %v470 = vld [vmem:[%s465 + $0x10] sm:$0xf]
    %v471 = vld [vmem:[%s465 + $0x14] sm:$0xf]
    %v472 = vld [vmem:[%s465 + $0x18] sm:$0xf]
    %v473 = vld [vmem:[%s465 + $0x1c] sm:$0xf]
    %v474 = vld [vmem:[%s465 + $0x20] sm:$0xf]
    %v475 = vld [vmem:[%s465 + $0x24] sm:$0xf]
    %v476 = vld [vmem:[%s465 + $0x28] sm:$0xf]
    %v477 = vld [vmem:[%s465 + $0x2c] sm:$0xf]
    %v478 = vld [vmem:[%s465 + $0x30] sm:$0xf]
    %v479 = vld [vmem:[%s465 + $0x34] sm:$0xf]
    %v480 = vld [vmem:[%s465 + $0x38] sm:$0xf]
    %v481 = vld [vmem:[%s465 + $0x3c] sm:$0xf]
    %s482 = scalar_lea.vmem %s3, 4
    %v483 = vld [vmem:[%s482] sm:$0x1]
    %v485 = vlaneseq
    %v486 = vshrl.u32 %v485, 7
    %v487 = vsub.s32 0, %v486
    %v488 = vrot.slane %v483, %v487
    %v506 = vunpack.c.l.b16 %v466
    %v507 = vunpack.c.l.b16 %v467
    %v508 = vunpack.c.l.b16 %v468
    %v509 = vunpack.c.l.b16 %v469
    %v510 = vunpack.c.l.b16 %v470
    %v511 = vunpack.c.l.b16 %v471
    %v512 = vunpack.c.l.b16 %v472
    %v513 = vunpack.c.l.b16 %v473
    %v514 = vunpack.c.l.b16 %v474
    %v515 = vunpack.c.l.b16 %v475
    %v516 = vunpack.c.l.b16 %v476
    %v517 = vunpack.c.l.b16 %v477
    %v518 = vunpack.c.l.b16 %v478
    %v519 = vunpack.c.l.b16 %v479
    %v520 = vunpack.c.l.b16 %v480
    %v521 = vunpack.c.l.b16 %v481
    %v522 = vpack.c.b16 %v507, %v506
    %v523 = vpack.c.b16 %v509, %v508
    %v524 = vpack.c.b16 %v511, %v510
    %v525 = vpack.c.b16 %v513, %v512
    %v526 = vpack.c.b16 %v515, %v514
    %v527 = vpack.c.b16 %v517, %v516
    %v528 = vpack.c.b16 %v519, %v518
    %v529 = vpack.c.b16 %v521, %v520
    %538 = vmatprep.subr.bf16.mxu0 0
    %539 = vmatpush1.bf16.msra.mxu0 %v522
    %540 = vmatprep.subr.bf16.mxu0 0
    %541 = vmatpush1.bf16.msra.mxu0 %v523
    %542 = vmatprep.subr.bf16.mxu0 0
    %543 = vmatpush1.bf16.msra.mxu0 %v524
    %544 = vmatprep.subr.bf16.mxu0 0
    %545 = vmatpush1.bf16.msra.mxu0 %v525
    %546 = vmatprep.subr.bf16.mxu0 0
    %547 = vmatpush1.bf16.msra.mxu0 %v526
    %548 = vmatprep.subr.bf16.mxu0 0
    %549 = vmatpush1.bf16.msra.mxu0 %v527
    %550 = vmatprep.subr.bf16.mxu0 0
    %551 = vmatpush1.bf16.msra.mxu0 %v528
    %552 = vmatprep.subr.bf16.mxu0 0
    %553 = vmatpush1.bf16.msra.mxu0 %v529
    %554 = vmatprep.subr.bf16.mxu0 0
    %555 = vmatpush1.bf16.msra.mxu0 0
    %556 = vmatprep.subr.bf16.mxu0 0
    %557 = vmatpush1.bf16.msra.mxu0 0
    %558 = vmatprep.subr.bf16.mxu0 0
    %559 = vmatpush1.bf16.msra.mxu0 0
    %560 = vmatprep.subr.bf16.mxu0 0
    %561 = vmatpush1.bf16.msra.mxu0 0
    %562 = vmatprep.subr.bf16.mxu0 0
    %563 = vmatpush1.bf16.msra.mxu0 0
    %564 = vmatprep.subr.bf16.mxu0 0
    %565 = vmatpush1.bf16.msra.mxu0 0
    %566 = vmatprep.subr.bf16.mxu0 0
    %567 = vmatpush1.bf16.msra.mxu0 0
    %568 = vmatprep.subr.bf16.mxu0 0
    %569 = vmatpush1.bf16.msra.mxu0 0
    %570 = vmatprep.mubr.bf16.mxu0 0
    %571 = vmatmul.mubr.bf16.gmra.mrb[0].mxu0 %v464
    %v572 = vpop.f32.mrb[0].mxu0
    %v573 = vadd.f32 %v488, %v572
    %v574 = vpop.f32.mrb[0].mxu0
    %v575 = vpop.f32.mrb[0].mxu0
    %v576 = vadd.f32 %v488, %v575
    %v577 = vpop.f32.mrb[0].mxu0
    %578 = vdwg.mxu0
    %v579 = vmax.f32 %v573, 0.0
    %v580 = vmax.f32 %v576, 0.0
    %v581 = vpack.c.bf16 %v580, %v579
    %s582 = scalar_lea.vmem [#allocation2], 256
    %v583 = vld [vmem:[%s582] sm:$0xf]
    %v584 = vld [vmem:[%s582 + $0x4] sm:$0xf]
    %v585 = vld [vmem:[%s582 + $0x8] sm:$0xf]
    %v586 = vld [vmem:[%s582 + $0xc] sm:$0xf]
    %v587 = vld [vmem:[%s582 + $0x10] sm:$0xf]
    %v588 = vld [vmem:[%s582 + $0x14] sm:$0xf]
    %v589 = vld [vmem:[%s582 + $0x18] sm:$0xf]
    %v590 = vld [vmem:[%s582 + $0x1c] sm:$0xf]
    %v591 = vld [vmem:[%s582 + $0x20] sm:$0xf]
    %v592 = vld [vmem:[%s582 + $0x24] sm:$0xf]
    %v593 = vld [vmem:[%s582 + $0x28] sm:$0xf]
    %v594 = vld [vmem:[%s582 + $0x2c] sm:$0xf]
    %v595 = vld [vmem:[%s582 + $0x30] sm:$0xf]
    %v596 = vld [vmem:[%s582 + $0x34] sm:$0xf]
    %v597 = vld [vmem:[%s582 + $0x38] sm:$0xf]
    %v598 = vld [vmem:[%s582 + $0x3c] sm:$0xf]
    %s599 = scalar_lea.vmem %s3, 5
    %v600 = vld [vmem:[%s599] sm:$0x1]
    %v602 = vlaneseq
    %v603 = vshrl.u32 %v602, 7
    %v604 = vsub.s32 0, %v603
    %v605 = vrot.slane %v600, %v604
    %v623 = vunpack.c.l.b16 %v583
    %v624 = vunpack.c.l.b16 %v584
    %v625 = vunpack.c.l.b16 %v585
    %v626 = vunpack.c.l.b16 %v586
    %v627 = vunpack.c.l.b16 %v587
    %v628 = vunpack.c.l.b16 %v588
    %v629 = vunpack.c.l.b16 %v589
    %v630 = vunpack.c.l.b16 %v590
    %v631 = vunpack.c.l.b16 %v591
    %v632 = vunpack.c.l.b16 %v592
    %v633 = vunpack.c.l.b16 %v593
    %v634 = vunpack.c.l.b16 %v594
    %v635 = vunpack.c.l.b16 %v595
    %v636 = vunpack.c.l.b16 %v596
    %v637 = vunpack.c.l.b16 %v597
    %v638 = vunpack.c.l.b16 %v598
    %v639 = vpack.c.b16 %v624, %v623
    %v640 = vpack.c.b16 %v626, %v625
    %v641 = vpack.c.b16 %v628, %v627
    %v642 = vpack.c.b16 %v630, %v629
    %v643 = vpack.c.b16 %v632, %v631
    %v644 = vpack.c.b16 %v634, %v633
    %v645 = vpack.c.b16 %v636, %v635
    %v646 = vpack.c.b16 %v638, %v637
    %655 = vmatprep.subr.bf16.mxu0 0
    %656 = vmatpush1.bf16.msra.mxu0 %v639
    %657 = vmatprep.subr.bf16.mxu0 0
    %658 = vmatpush1.bf16.msra.mxu0 %v640
    %659 = vmatprep.subr.bf16.mxu0 0
    %660 = vmatpush1.bf16.msra.mxu0 %v641
    %661 = vmatprep.subr.bf16.mxu0 0
    %662 = vmatpush1.bf16.msra.mxu0 %v642
    %663 = vmatprep.subr.bf16.mxu0 0
    %664 = vmatpush1.bf16.msra.mxu0 %v643
    %665 = vmatprep.subr.bf16.mxu0 0
    %666 = vmatpush1.bf16.msra.mxu0 %v644
    %667 = vmatprep.subr.bf16.mxu0 0
    %668 = vmatpush1.bf16.msra.mxu0 %v645
    %669 = vmatprep.subr.bf16.mxu0 0
    %670 = vmatpush1.bf16.msra.mxu0 %v646
    %671 = vmatprep.subr.bf16.mxu0 0
    %672 = vmatpush1.bf16.msra.mxu0 0
    %673 = vmatprep.subr.bf16.mxu0 0
    %674 = vmatpush1.bf16.msra.mxu0 0
    %675 = vmatprep.subr.bf16.mxu0 0
    %676 = vmatpush1.bf16.msra.mxu0 0
    %677 = vmatprep.subr.bf16.mxu0 0
    %678 = vmatpush1.bf16.msra.mxu0 0
    %679 = vmatprep.subr.bf16.mxu0 0
    %680 = vmatpush1.bf16.msra.mxu0 0
    %681 = vmatprep.subr.bf16.mxu0 0
    %682 = vmatpush1.bf16.msra.mxu0 0
    %683 = vmatprep.subr.bf16.mxu0 0
    %684 = vmatpush1.bf16.msra.mxu0 0
    %685 = vmatprep.subr.bf16.mxu0 0
    %686 = vmatpush1.bf16.msra.mxu0 0
    %687 = vmatprep.mubr.bf16.mxu0 0
    %688 = vmatmul.mubr.bf16.gmra.mrb[0].mxu0 %v581
    %v689 = vpop.f32.mrb[0].mxu0
    %v690 = vadd.f32 %v605, %v689
    %v691 = vpop.f32.mrb[0].mxu0
    %v692 = vpop.f32.mrb[0].mxu0
    %v693 = vadd.f32 %v605, %v692
    %v694 = vpop.f32.mrb[0].mxu0
    %695 = vdwg.mxu0
    %vm696 = vcmask 334848
    %697 = vst.msk [vmem:[#allocation5] sm:$0xff] %vm696, %v690
    %698 = vst.msk [vmem:[#allocation5 + $0x8] sm:$0xff] %vm696, %v693
    // Predicated region
    $region22: #{autoencoder_fcn.1} parent=1 // pred_check
      _
    $region23: #{autoencoder_fcn.1} parent=1 // pred_check_branch
      %700 = sbr.rel (0) target = $region25
    $region24: #{autoencoder_fcn.1} parent=1 // pred_region
      %s702 = ssub.s32 256, 256
      %703 = vsyncadd [#allocation4], %s702
      %s704 = sshll.u32 [#allocation5], 4
      %s705 = int_to_ptr.vmem [resolvable:$true] %s704
      %710 = dma.vmem_to_hbm [thread:$0]  %s705, 256, %s4, [#allocation4], 128, 128, 8
    $region25: #{autoencoder_fcn.1} parent=1 // pred_fallthru
      _
    // Predicated region
    $region26: #{autoencoder_fcn.1} parent=1 // pred_check
      _
    $region27: #{autoencoder_fcn.1} parent=1 // pred_check_branch
      %712 = sbr.rel (0) target = $region29
    $region28: #{autoencoder_fcn.1} parent=1 // pred_region
      %713 = dma.done [#allocation4], 256
    $region29: #{autoencoder_fcn.1} parent=1 // pred_fallthru
      _
    %714 = vsyncpa [#allocation3], 1
    %715 = vsyncpa [#allocation4], 1

</llo_original>
